<compile_context>
chip_gen: v6e
topology: v6e:2x2x1
jax: 0.10.0
libtpu: 0.0.40
codegen_flags: <defaults>
</compile_context>

<pallas_src>
import jax
import jax.numpy as jnp
from jax.experimental import pallas as pl
from jax.experimental.pallas import tpu as pltpu

LANE = 128


def _round_up(x, m):
    return ((x + m - 1) // m) * m


def mlp_kernel(x_ref, w1_ref, b1_ref, w2_ref, b2_ref, o_ref):
    # h = relu(x @ W1 + b1): bf16 operands on the MXU, f32 accumulation.
    h = jnp.dot(x_ref[...], w1_ref[...], preferred_element_type=jnp.float32)
    h = jnp.maximum(h + b1_ref[...], 0.0)
    # out = h @ W2 + b2: cast activations back to bf16 for the MXU, acc in f32.
    out = jnp.dot(h.astype(w2_ref.dtype), w2_ref[...],
                  preferred_element_type=jnp.float32)
    o_ref[...] = (out + b2_ref[...]).astype(o_ref.dtype)


def mlp_forward(x, w1, b1, w2, b2, edge_index=None, *, tile_m=1024):
    """x: [N, F] float32. w1: [F, H], w2: [H, O] (transposed vs torch).
    Returns [N, O] float32. edge_index is ignored (as in the reference)."""
    N, F = x.shape
    H = w1.shape[1]
    O = w2.shape[1]

    # --- lane-dense output: pad the class dim up to a multiple of 128 ---
    O_pad = _round_up(O, LANE)
    w2p = jnp.zeros((H, O_pad), jnp.float32).at[:, :O].set(w2)
    b2p = jnp.zeros((1, O_pad), jnp.float32).at[0, :O].set(b2)
    b1_2d = b1.reshape(1, H).astype(jnp.float32)

    # --- row tiling: large tiles amortize per-grid-step overhead ---
    tile_m = min(tile_m, _round_up(N, 8))       # don't over-pad tiny inputs
    tile_m = _round_up(tile_m, 8)               # (8,128) sublane constraint
    N_pad = _round_up(N, tile_m)
    if N_pad != N:
        x = jnp.zeros((N_pad, F), x.dtype).at[:N].set(x)

    # --- bf16 operands for the MXU (accumulation stays f32 in-kernel) ---
    x_bf = x.astype(jnp.bfloat16)
    w1_bf = w1.astype(jnp.bfloat16)
    w2_bf = w2p.astype(jnp.bfloat16)

    grid = (N_pad // tile_m,)
    out = pl.pallas_call(
        mlp_kernel,
        out_shape=jax.ShapeDtypeStruct((N_pad, O_pad), jnp.float32),
        grid_spec=pltpu.PrefetchScalarGridSpec(
            num_scalar_prefetch=0,
            grid=grid,
            in_specs=[
                pl.BlockSpec((tile_m, F), lambda i: (i, 0)),   # x row tile
                pl.BlockSpec((F, H), lambda i: (0, 0)),        # W1 (resident)
                pl.BlockSpec((1, H), lambda i: (0, 0)),        # b1
                pl.BlockSpec((H, O_pad), lambda i: (0, 0)),    # W2 padded
                pl.BlockSpec((1, O_pad), lambda i: (0, 0)),    # b2 padded
            ],
            out_specs=pl.BlockSpec((tile_m, O_pad), lambda i: (i, 0)),
        ),
        compiler_params=pltpu.CompilerParams(
            dimension_semantics=("parallel",),
            vmem_limit_bytes=32 * 1024 * 1024,
        ),
    )(x_bf, w1_bf, b1_2d, w2_bf, b2p)

    # Strip row padding and the lane padding of the output dim.
    return out[:N, :O]


def init_params(key, feature_length, hidden_size, out_size):
    """Deterministic init mimicking torch.nn.Linear: U(-1/sqrt(fan_in), +1/sqrt(fan_in))."""
    k1, k2, k3, k4 = jax.random.split(key, 4)
    bound1 = 1.0 / (feature_length ** 0.5)
    bound2 = 1.0 / (hidden_size ** 0.5)
    # stored transposed vs torch: [in, out]
    w1 = jax.random.uniform(k1, (feature_length, hidden_size), jnp.float32,
                            -bound1, bound1)
    b1 = jax.random.uniform(k2, (hidden_size,), jnp.float32, -bound1, bound1)
    w2 = jax.random.uniform(k3, (hidden_size, out_size), jnp.float32,
                            -bound2, bound2)
    b2 = jax.random.uniform(k4, (out_size,), jnp.float32, -bound2, bound2)
    return w1, b1, w2, b2


if __name__ == "__main__":
    # Small shapes consistent with the module:
    #   N=128 nodes, feature_length=16, hidden_size=128, out_size=8 classes.
    N, FEAT, HID, OUT = 128, 16, 128, 8

    key = jax.random.PRNGKey(0)
    kx, kp, ke = jax.random.split(key, 3)

    x = jax.random.normal(kx, (N, FEAT), jnp.float32)
    # edge_index like PyG: [2, E] int array — unused by the forward pass.
    edge_index = jax.random.randint(ke, (2, 64), 0, N, dtype=jnp.int32)

    w1, b1, w2, b2 = init_params(kp, FEAT, HID, OUT)

    out = mlp_forward(x, w1, b1, w2, b2, edge_index)
    out = jax.block_until_ready(out)

    # Reference check in plain JAX (eval-mode forward: dropout is identity).
    # Tolerance loosened because the kernel runs the matmuls in bf16 (f32 acc).
    ref = jnp.maximum(x @ w1 + b1, 0.0) @ w2 + b2
    assert out.shape == (N, OUT)
    assert jnp.allclose(out, ref, atol=3e-2, rtol=3e-2), "mismatch vs reference"

    print("KERNEL_OK")
</pallas_src>

<mosaic_0001>
module attributes {stable_mosaic.version = 11 : i64} {
  func.func @mlp_kernel(%arg0: i32, %arg1: memref<128x16xbf16, #tpu.memory_space<vmem>>, %arg2: memref<16x128xbf16, #tpu.memory_space<vmem>>, %arg3: memref<1x128xf32, #tpu.memory_space<vmem>>, %arg4: memref<128x128xbf16, #tpu.memory_space<vmem>>, %arg5: memref<1x128xf32, #tpu.memory_space<vmem>>, %arg6: memref<128x128xf32, #tpu.memory_space<vmem>>) attributes {dimension_semantics = [#tpu.dimension_semantics<parallel>], iteration_bounds = array<i64: 1>, scalar_prefetch = 0 : i64, scratch_operands = 0 : i64, tpu.core_type = #tpu.core_type<tc>, window_params = [{transform_indices = @transform_0, window_bounds = array<i64: 128, 16>}, {pipeline_mode = #tpu.pipeline_mode<synchronous>, transform_indices = @transform_1, window_bounds = array<i64: 16, 128>}, {pipeline_mode = #tpu.pipeline_mode<synchronous>, transform_indices = @transform_2, window_bounds = array<i64: 1, 128>}, {pipeline_mode = #tpu.pipeline_mode<synchronous>, transform_indices = @transform_3, window_bounds = array<i64: 128, 128>}, {pipeline_mode = #tpu.pipeline_mode<synchronous>, transform_indices = @transform_4, window_bounds = array<i64: 1, 128>}, {transform_indices = @transform_5, window_bounds = array<i64: 128, 128>}]} {
    %c0 = arith.constant 0 : index
    %c0_0 = arith.constant 0 : index
    %0 = vector.load %arg1[%c0, %c0_0] : memref<128x16xbf16, #tpu.memory_space<vmem>>, vector<128x16xbf16>
    %c0_1 = arith.constant 0 : index
    %c0_2 = arith.constant 0 : index
    %1 = vector.load %arg2[%c0_1, %c0_2] : memref<16x128xbf16, #tpu.memory_space<vmem>>, vector<16x128xbf16>
    %cst = arith.constant dense<0.000000e+00> : vector<128x128xf32>
    %2 = tpu.matmul %0, %1, %cst {dimension_numbers = #tpu.dot_dimension_numbers<[1], [0], [0], [1], [0, 0, 1, 1], [], []>} : vector<128x16xbf16>, vector<16x128xbf16>, vector<128x128xf32> -> vector<128x128xf32>
    %c0_3 = arith.constant 0 : index
    %c0_4 = arith.constant 0 : index
    %3 = vector.load %arg3[%c0_3, %c0_4] : memref<1x128xf32, #tpu.memory_space<vmem>>, vector<1x128xf32>
    %4 = vector.broadcast %3 : vector<1x128xf32> to vector<128x128xf32>
    %5 = arith.addf %2, %4 : vector<128x128xf32>
    %cst_5 = arith.constant 0.000000e+00 : f32
    %6 = vector.broadcast %cst_5 : f32 to vector<128x128xf32>
    %7 = arith.maximumf %5, %6 : vector<128x128xf32>
    %8 = arith.truncf %7 : vector<128x128xf32> to vector<128x128xbf16>
    %c0_6 = arith.constant 0 : index
    %c0_7 = arith.constant 0 : index
    %9 = vector.load %arg4[%c0_6, %c0_7] : memref<128x128xbf16, #tpu.memory_space<vmem>>, vector<128x128xbf16>
    %cst_8 = arith.constant dense<0.000000e+00> : vector<128x128xf32>
    %10 = tpu.matmul %8, %9, %cst_8 {dimension_numbers = #tpu.dot_dimension_numbers<[1], [0], [0], [1], [0, 0, 1, 1], [], []>} : vector<128x128xbf16>, vector<128x128xbf16>, vector<128x128xf32> -> vector<128x128xf32>
    %c0_9 = arith.constant 0 : index
    %c0_10 = arith.constant 0 : index
    %11 = vector.load %arg5[%c0_9, %c0_10] : memref<1x128xf32, #tpu.memory_space<vmem>>, vector<1x128xf32>
    %12 = vector.broadcast %11 : vector<1x128xf32> to vector<128x128xf32>
    %13 = arith.addf %10, %12 : vector<128x128xf32>
    %c0_11 = arith.constant 0 : index
    %c0_12 = arith.constant 0 : index
    %14 = vector.load %arg6[%c0_11, %c0_12] : memref<128x128xf32, #tpu.memory_space<vmem>>, vector<128x128xf32>
    tpu.vector_store %arg6[%c0_11, %c0_12], %13 {strides = array<i32>} : memref<128x128xf32, #tpu.memory_space<vmem>>, vector<128x128xf32>,
    return
  }
  func.func @transform_0(%arg0: i32) -> (i32, i32) {
    %c0_i32 = arith.constant 0 : i32
    %c0_i32_0 = arith.constant 0 : i32
    return %arg0, %c0_i32 : i32, i32
  }
  func.func @transform_1(%arg0: i32) -> (i32, i32) {
    %c0_i32 = arith.constant 0 : i32
    %c0_i32_0 = arith.constant 0 : i32
    %c0_i32_1 = arith.constant 0 : i32
    return %c0_i32, %c0_i32_0 : i32, i32
  }
  func.func @transform_2(%arg0: i32) -> (i32, i32) {
    %c0_i32 = arith.constant 0 : i32
    %c0_i32_0 = arith.constant 0 : i32
    %c0_i32_1 = arith.constant 0 : i32
    return %c0_i32, %c0_i32_0 : i32, i32
  }
  func.func @transform_3(%arg0: i32) -> (i32, i32) {
    %c0_i32 = arith.constant 0 : i32
    %c0_i32_0 = arith.constant 0 : i32
    %c0_i32_1 = arith.constant 0 : i32
    return %c0_i32, %c0_i32_0 : i32, i32
  }
  func.func @transform_4(%arg0: i32) -> (i32, i32) {
    %c0_i32 = arith.constant 0 : i32
    %c0_i32_0 = arith.constant 0 : i32
    %c0_i32_1 = arith.constant 0 : i32
    return %c0_i32, %c0_i32_0 : i32, i32
  }
  func.func @transform_5(%arg0: i32) -> (i32, i32) {
    %c0_i32 = arith.constant 0 : i32
    %c0_i32_0 = arith.constant 0 : i32
    return %arg0, %c0_i32 : i32, i32
  }
}

</mosaic_0001>

<llo_original>
// kernel: tpu_custom_call.1
$region0: #{tpu_custom_call.1}
  #allocation0 [shape = 'u32[]', space=smem, size = 0x4, offset = 0x4, fixed_abs, tag = 'smem constant byte address 0x4 - core index']
  #allocation1 [shape = 'u32[144,128]{1,0:T(1,128)}', space=vmem, size = 0x12000, scoped, tag = 'internal scratch']
  %s0 = inlined_call_operand.vmem [shape: bf16[128,16], index: 0, kind: input, shape index: {}]
  %s1 = inlined_call_operand.vmem [shape: bf16[16,128], index: 1, kind: input, shape index: {}]
  %s2 = inlined_call_operand.vmem [shape: f32[1,128], index: 2, kind: input, shape index: {}]
  %s3 = inlined_call_operand.vmem [shape: bf16[128,128], index: 3, kind: input, shape index: {}]
  %s4 = inlined_call_operand.vmem [shape: f32[1,128], index: 4, kind: input, shape index: {}]
  %s5 = inlined_call_operand.hbm [shape: f32[128,128], index: 5, kind: output, shape index: {}]
  %s6 = sld [smem:[#allocation0]]
  $region30: #{tpu_custom_call.1} parent=0
    _
  %s8 = ssub.s32 1, %s6
  %s9 = scalar_select 0, %s8, %s6
  $region1: #{tpu_custom_call.1} parent=0
    #allocation2 [shape = 'u8[65536]{0}', space=vmem, size = 0x10000, scoped, tag = 'output window, operand 0, single buffered']
    #allocation3 [shape = 's32[1]{0}', space=sflag, size = 0x4, scoped, tag = 'scoped memory for tpu_custom_call.1']
    %10 = vsyncpa [#allocation3], 0
    // Predicated region
    $region2: #{tpu_custom_call.1} parent=1 // pred_check
      _
    $region3: #{tpu_custom_call.1} parent=1 // pred_check_branch
      %12 = sbr.rel (0) target = $region5
    $region4: #{tpu_custom_call.1} parent=1 // pred_region
      _
    $region5: #{tpu_custom_call.1} parent=1 // pred_fallthru
      _
    // Predicated region
    $region6: #{tpu_custom_call.1} parent=1 // pred_check
      _
    $region7: #{tpu_custom_call.1} parent=1 // pred_check_branch
      %14 = sbr.rel (0) target = $region9
    $region8: #{tpu_custom_call.1} parent=1 // pred_region
      _
    $region9: #{tpu_custom_call.1} parent=1 // pred_fallthru
      _
    // Predicated region
    $region10: #{tpu_custom_call.1} parent=1 // pred_check
      _
    $region11: #{tpu_custom_call.1} parent=1 // pred_check_branch
      %16 = sbr.rel (0) target = $region13
    $region12: #{tpu_custom_call.1} parent=1 // pred_region
      _
    $region13: #{tpu_custom_call.1} parent=1 // pred_fallthru
      _
    // Predicated region
    $region14: #{tpu_custom_call.1} parent=1 // pred_check
      _
    $region15: #{tpu_custom_call.1} parent=1 // pred_check_branch
      %18 = sbr.rel (0) target = $region17
    $region16: #{tpu_custom_call.1} parent=1 // pred_region
      _
    $region17: #{tpu_custom_call.1} parent=1 // pred_fallthru
      _
    // Predicated region
    $region18: #{tpu_custom_call.1} parent=1 // pred_check
      _
    $region19: #{tpu_custom_call.1} parent=1 // pred_check_branch
      %20 = sbr.rel (0) target = $region21
    $region20: #{tpu_custom_call.1} parent=1 // pred_region
      _
    $region21: #{tpu_custom_call.1} parent=1 // pred_fallthru
      _
    %v22 = vld [vmem:[%s0] sm:$0xf]
    %v23 = vld [vmem:[%s0 + $0x4] sm:$0xf]
    %v24 = vld [vmem:[%s0 + $0x8] sm:$0xf]
    %v25 = vld [vmem:[%s0 + $0xc] sm:$0xf]
    %v26 = vld [vmem:[%s0 + $0x10] sm:$0xf]
    %v27 = vld [vmem:[%s0 + $0x14] sm:$0xf]
    %v28 = vld [vmem:[%s0 + $0x18] sm:$0xf]
    %v29 = vld [vmem:[%s0 + $0x1c] sm:$0xf]
    %v30 = vld [vmem:[%s0 + $0x20] sm:$0xf]
    %v31 = vld [vmem:[%s0 + $0x24] sm:$0xf]
    %v32 = vld [vmem:[%s0 + $0x28] sm:$0xf]
    %v33 = vld [vmem:[%s0 + $0x2c] sm:$0xf]
    %v34 = vld [vmem:[%s0 + $0x30] sm:$0xf]
    %v35 = vld [vmem:[%s0 + $0x34] sm:$0xf]
    %v36 = vld [vmem:[%s0 + $0x38] sm:$0xf]
    %v37 = vld [vmem:[%s0 + $0x3c] sm:$0xf]
    %v38 = vld [vmem:[%s1] sm:$0xf]
    %v39 = vld [vmem:[%s1 + $0x4] sm:$0xf]
    %v40 = vld [vmem:[%s2] sm:$0x1]
    %v42 = vlaneseq
    %v43 = vshrl.u32 %v42, 7
    %v44 = vsub.s32 0, %v43
    %v45 = vrot.slane %v40, %v44
    %v63 = vunpack.c.l.b16 %v22
    %v64 = vunpack.c.l.b16 %v23
    %v65 = vunpack.c.l.b16 %v24
    %v66 = vunpack.c.l.b16 %v25
    %v67 = vunpack.c.l.b16 %v26
    %v68 = vunpack.c.l.b16 %v27
    %v69 = vunpack.c.l.b16 %v28
    %v70 = vunpack.c.l.b16 %v29
    %v71 = vunpack.c.l.b16 %v30
    %v72 = vunpack.c.l.b16 %v31
    %v73 = vunpack.c.l.b16 %v32
    %v74 = vunpack.c.l.b16 %v33
    %v75 = vunpack.c.l.b16 %v34
    %v76 = vunpack.c.l.b16 %v35
    %v77 = vunpack.c.l.b16 %v36
    %v78 = vunpack.c.l.b16 %v37
    %v79 = vpack.c.b16 %v64, %v63
    %v80 = vpack.c.b16 %v66, %v65
    %v81 = vpack.c.b16 %v68, %v67
    %v82 = vpack.c.b16 %v70, %v69
    %v83 = vpack.c.b16 %v72, %v71
    %v84 = vpack.c.b16 %v74, %v73
    %v85 = vpack.c.b16 %v76, %v75
    %v86 = vpack.c.b16 %v78, %v77
    %v89 = vunpack.c.l.b16 %v38
    %v90 = vunpack.c.l.b16 %v39
    %v91 = vpack.c.b16 %v90, %v89
    %vm93 = vcmask 130048
    %v95 = vsel %vm93, %v79, 0
    %v98 = vsel %vm93, %v80, 0
    %v101 = vsel %vm93, %v81, 0
    %v104 = vsel %vm93, %v82, 0
    %v107 = vsel %vm93, %v83, 0
    %v110 = vsel %vm93, %v84, 0
    %v113 = vsel %vm93, %v85, 0
    %v116 = vsel %vm93, %v86, 0
    %118 = vmatprep.subr.bf16.mxu0 0
    %119 = vmatpush1.bf16.msra.mxu0 0
    %120 = vmatprep.subr.bf16.mxu0 0
    %121 = vmatpush1.bf16.msra.mxu0 0
    %122 = vmatprep.subr.bf16.mxu0 0
    %123 = vmatpush1.bf16.msra.mxu0 0
    %124 = vmatprep.subr.bf16.mxu0 0
    %125 = vmatpush1.bf16.msra.mxu0 0
    %126 = vmatprep.subr.bf16.mxu0 0
    %127 = vmatpush1.bf16.msra.mxu0 0
    %128 = vmatprep.subr.bf16.mxu0 0
    %129 = vmatpush1.bf16.msra.mxu0 0
    %130 = vmatprep.subr.bf16.mxu0 0
    %131 = vmatpush1.bf16.msra.mxu0 0
    %132 = vmatprep.subr.bf16.mxu0 0
    %133 = vmatpush1.bf16.msra.mxu0 %v91
    %134 = vmatprep.subr.bf16.mxu0 0
    %135 = vmatpush2.bf16.msra.mxu0 0
    %136 = vmatprep.subr.bf16.mxu0 0
    %137 = vmatpush2.bf16.msra.mxu0 0
    %138 = vmatprep.subr.bf16.mxu0 0
    %139 = vmatpush2.bf16.msra.mxu0 0
    %140 = vmatprep.subr.bf16.mxu0 0
    %141 = vmatpush2.bf16.msra.mxu0 0
    %142 = vmatprep.subr.bf16.mxu0 0
    %143 = vmatpush2.bf16.msra.mxu0 0
    %144 = vmatprep.subr.bf16.mxu0 0
    %145 = vmatpush2.bf16.msra.mxu0 0
    %146 = vmatprep.subr.bf16.mxu0 0
    %147 = vmatpush2.bf16.msra.mxu0 0
    %148 = vmatprep.subr.bf16.mxu0 0
    %149 = vmatpush2.bf16.msra.mxu0 0
    %150 = vmatprep.mubr.bf16.mxu0 0
    %151 = vmatmul.mubr.bf16.gmra.mxu0 %v95
    %v152 = vpop.f32.mrf.mxu0
    %v153 = vadd.f32 %v45, %v152
    %v154 = vpop.f32.mrf.mxu0
    %v155 = vpop.f32.mrf.mxu0
    %v156 = vadd.f32 %v45, %v155
    %v157 = vpop.f32.mrf.mxu0
    %158 = vmatprep.mubr.bf16.mxu0 0
    %159 = vmatmul.mubr.bf16.gmra.mxu0 %v98
    %v160 = vpop.f32.mrf.mxu0
    %v161 = vadd.f32 %v45, %v160
    %v162 = vpop.f32.mrf.mxu0
    %v163 = vpop.f32.mrf.mxu0
    %v164 = vadd.f32 %v45, %v163
    %v165 = vpop.f32.mrf.mxu0
    %166 = vmatprep.mubr.bf16.mxu0 0
    %167 = vmatmul.mubr.bf16.gmra.mxu0 %v101
    %v168 = vpop.f32.mrf.mxu0
    %v169 = vadd.f32 %v45, %v168
    %v170 = vpop.f32.mrf.mxu0
    %v171 = vpop.f32.mrf.mxu0
    %v172 = vadd.f32 %v45, %v171
    %v173 = vpop.f32.mrf.mxu0
    %174 = vmatprep.mubr.bf16.mxu0 0
    %175 = vmatmul.mubr.bf16.gmra.mxu0 %v104
    %v176 = vpop.f32.mrf.mxu0
    %v177 = vadd.f32 %v45, %v176
    %v178 = vpop.f32.mrf.mxu0
    %v179 = vpop.f32.mrf.mxu0
    %v180 = vadd.f32 %v45, %v179
    %v181 = vpop.f32.mrf.mxu0
    %182 = vmatprep.mubr.bf16.mxu0 0
    %183 = vmatmul.mubr.bf16.gmra.mxu0 %v107
    %v184 = vpop.f32.mrf.mxu0
    %v185 = vadd.f32 %v45, %v184
    %v186 = vpop.f32.mrf.mxu0
    %v187 = vpop.f32.mrf.mxu0
    %v188 = vadd.f32 %v45, %v187
    %v189 = vpop.f32.mrf.mxu0
    %190 = vmatprep.mubr.bf16.mxu0 0
    %191 = vmatmul.mubr.bf16.gmra.mxu0 %v110
    %v192 = vpop.f32.mrf.mxu0
    %v193 = vadd.f32 %v45, %v192
    %v194 = vpop.f32.mrf.mxu0
    %v195 = vpop.f32.mrf.mxu0
    %v196 = vadd.f32 %v45, %v195
    %v197 = vpop.f32.mrf.mxu0
    %198 = vmatprep.mubr.bf16.mxu0 0
    %199 = vmatmul.mubr.bf16.gmra.mxu0 %v113
    %v200 = vpop.f32.mrf.mxu0
    %v201 = vadd.f32 %v45, %v200
    %v202 = vpop.f32.mrf.mxu0
    %v203 = vpop.f32.mrf.mxu0
    %v204 = vadd.f32 %v45, %v203
    %v205 = vpop.f32.mrf.mxu0
    %206 = vmatprep.mubr.bf16.mxu0 0
    %207 = vmatmul.mubr.bf16.gmra.mxu0 %v116
    %v208 = vpop.f32.mrf.mxu0
    %v209 = vadd.f32 %v45, %v208
    %v210 = vpop.f32.mrf.mxu0
    %v211 = vpop.f32.mrf.mxu0
    %v212 = vadd.f32 %v45, %v211
    %v213 = vpop.f32.mrf.mxu0
    %214 = vdwg.mxu0
    %v215 = vmax.f32 %v153, 0.0
    %v216 = vmax.f32 %v156, 0.0
    %v217 = vmax.f32 %v161, 0.0
    %v218 = vmax.f32 %v164, 0.0
    %v219 = vmax.f32 %v169, 0.0
    %v220 = vmax.f32 %v172, 0.0
    %v221 = vmax.f32 %v177, 0.0
    %v222 = vmax.f32 %v180, 0.0
    %v223 = vmax.f32 %v185, 0.0
    %v224 = vmax.f32 %v188, 0.0
    %v225 = vmax.f32 %v193, 0.0
    %v226 = vmax.f32 %v196, 0.0
    %v227 = vmax.f32 %v201, 0.0
    %v228 = vmax.f32 %v204, 0.0
    %v229 = vmax.f32 %v209, 0.0
    %v230 = vmax.f32 %v212, 0.0
    %v231 = vpack.c.bf16 %v216, %v215
    %v232 = vpack.c.bf16 %v218, %v217
    %v233 = vpack.c.bf16 %v220, %v219
    %v234 = vpack.c.bf16 %v222, %v221
    %v235 = vpack.c.bf16 %v224, %v223
    %v236 = vpack.c.bf16 %v226, %v225
    %v237 = vpack.c.bf16 %v228, %v227
    %v238 = vpack.c.bf16 %v230, %v229
    %v239 = vld [vmem:[%s3] sm:$0xf]
    %v240 = vld [vmem:[%s3 + $0x4] sm:$0xf]
    %v241 = vld [vmem:[%s3 + $0x8] sm:$0xf]
    %v242 = vld [vmem:[%s3 + $0xc] sm:$0xf]
    %v243 = vld [vmem:[%s3 + $0x10] sm:$0xf]
    %v244 = vld [vmem:[%s3 + $0x14] sm:$0xf]
    %v245 = vld [vmem:[%s3 + $0x18] sm:$0xf]
    %v246 = vld [vmem:[%s3 + $0x1c] sm:$0xf]
    %v247 = vld [vmem:[%s3 + $0x20] sm:$0xf]
    %v248 = vld [vmem:[%s3 + $0x24] sm:$0xf]
    %v249 = vld [vmem:[%s3 + $0x28] sm:$0xf]
    %v250 = vld [vmem:[%s3 + $0x2c] sm:$0xf]
    %v251 = vld [vmem:[%s3 + $0x30] sm:$0xf]
    %v252 = vld [vmem:[%s3 + $0x34] sm:$0xf]
    %v253 = vld [vmem:[%s3 + $0x38] sm:$0xf]
    %v254 = vld [vmem:[%s3 + $0x3c] sm:$0xf]
    %v255 = vld [vmem:[%s4] sm:$0x1]
    %v257 = vlaneseq
    %v258 = vshrl.u32 %v257, 7
    %v259 = vsub.s32 0, %v258
    %v260 = vrot.slane %v255, %v259
    %v278 = vunpack.c.l.b16 %v239
    %v279 = vunpack.c.l.b16 %v240
    %v280 = vunpack.c.l.b16 %v241
    %v281 = vunpack.c.l.b16 %v242
    %v282 = vunpack.c.l.b16 %v243
    %v283 = vunpack.c.l.b16 %v244
    %v284 = vunpack.c.l.b16 %v245
    %v285 = vunpack.c.l.b16 %v246
    %v286 = vunpack.c.l.b16 %v247
    %v287 = vunpack.c.l.b16 %v248
    %v288 = vunpack.c.l.b16 %v249
    %v289 = vunpack.c.l.b16 %v250
    %v290 = vunpack.c.l.b16 %v251
    %v291 = vunpack.c.l.b16 %v252
    %v292 = vunpack.c.l.b16 %v253
    %v293 = vunpack.c.l.b16 %v254
    %v294 = vpack.c.b16 %v279, %v278
    %v295 = vpack.c.b16 %v281, %v280
    %v296 = vpack.c.b16 %v283, %v282
    %v297 = vpack.c.b16 %v285, %v284
    %v298 = vpack.c.b16 %v287, %v286
    %v299 = vpack.c.b16 %v289, %v288
    %v300 = vpack.c.b16 %v291, %v290
    %v301 = vpack.c.b16 %v293, %v292
    %310 = vmatprep.subr.bf16.mxu0 0
    %311 = vmatpush1.bf16.msra.mxu0 %v301
    %312 = vmatprep.subr.bf16.mxu0 0
    %313 = vmatpush1.bf16.msra.mxu0 %v300
    %314 = vmatprep.subr.bf16.mxu0 0
    %315 = vmatpush1.bf16.msra.mxu0 %v299
    %316 = vmatprep.subr.bf16.mxu0 0
    %317 = vmatpush1.bf16.msra.mxu0 %v298
    %318 = vmatprep.subr.bf16.mxu0 0
    %319 = vmatpush1.bf16.msra.mxu0 %v297
    %320 = vmatprep.subr.bf16.mxu0 0
    %321 = vmatpush1.bf16.msra.mxu0 %v296
    %322 = vmatprep.subr.bf16.mxu0 0
    %323 = vmatpush1.bf16.msra.mxu0 %v295
    %324 = vmatprep.subr.bf16.mxu0 0
    %325 = vmatpush1.bf16.msra.mxu0 %v294
    %326 = vmatprep.subr.bf16.mxu0 0
    %327 = vmatpush2.bf16.msra.mxu0 0
    %328 = vmatprep.subr.bf16.mxu0 0
    %329 = vmatpush2.bf16.msra.mxu0 0
    %330 = vmatprep.subr.bf16.mxu0 0
    %331 = vmatpush2.bf16.msra.mxu0 0
    %332 = vmatprep.subr.bf16.mxu0 0
    %333 = vmatpush2.bf16.msra.mxu0 0
    %334 = vmatprep.subr.bf16.mxu0 0
    %335 = vmatpush2.bf16.msra.mxu0 0
    %336 = vmatprep.subr.bf16.mxu0 0
    %337 = vmatpush2.bf16.msra.mxu0 0
    %338 = vmatprep.subr.bf16.mxu0 0
    %339 = vmatpush2.bf16.msra.mxu0 0
    %340 = vmatprep.subr.bf16.mxu0 0
    %341 = vmatpush2.bf16.msra.mxu0 0
    %342 = vmatprep.mubr.bf16.mxu0 0
    %343 = vmatmul.mubr.bf16.gmra.mxu0 %v231
    %v344 = vpop.f32.mrf.mxu0
    %v345 = vadd.f32 %v260, %v344
    %v346 = vpop.f32.mrf.mxu0
    %v347 = vpop.f32.mrf.mxu0
    %v348 = vadd.f32 %v260, %v347
    %v349 = vpop.f32.mrf.mxu0
    %350 = vmatprep.mubr.bf16.mxu0 0
    %351 = vmatmul.mubr.bf16.gmra.mxu0 %v232
    %v352 = vpop.f32.mrf.mxu0
    %v353 = vadd.f32 %v260, %v352
    %v354 = vpop.f32.mrf.mxu0
    %v355 = vpop.f32.mrf.mxu0
    %v356 = vadd.f32 %v260, %v355
    %v357 = vpop.f32.mrf.mxu0
    %358 = vmatprep.mubr.bf16.mxu0 0
    %359 = vmatmul.mubr.bf16.gmra.mxu0 %v233
    %v360 = vpop.f32.mrf.mxu0
    %v361 = vadd.f32 %v260, %v360
    %v362 = vpop.f32.mrf.mxu0
    %v363 = vpop.f32.mrf.mxu0
    %v364 = vadd.f32 %v260, %v363
    %v365 = vpop.f32.mrf.mxu0
    %366 = vmatprep.mubr.bf16.mxu0 0
    %367 = vmatmul.mubr.bf16.gmra.mxu0 %v234
    %v368 = vpop.f32.mrf.mxu0
    %v369 = vadd.f32 %v260, %v368
    %v370 = vpop.f32.mrf.mxu0
    %v371 = vpop.f32.mrf.mxu0
    %v372 = vadd.f32 %v260, %v371
    %v373 = vpop.f32.mrf.mxu0
    %374 = vmatprep.mubr.bf16.mxu0 0
    %375 = vmatmul.mubr.bf16.gmra.mxu0 %v235
    %v376 = vpop.f32.mrf.mxu0
    %v377 = vadd.f32 %v260, %v376
    %v378 = vpop.f32.mrf.mxu0
    %v379 = vpop.f32.mrf.mxu0
    %v380 = vadd.f32 %v260, %v379
    %v381 = vpop.f32.mrf.mxu0
    %382 = vmatprep.mubr.bf16.mxu0 0
    %383 = vmatmul.mubr.bf16.gmra.mxu0 %v236
    %v384 = vpop.f32.mrf.mxu0
    %v385 = vadd.f32 %v260, %v384
    %v386 = vpop.f32.mrf.mxu0
    %v387 = vpop.f32.mrf.mxu0
    %v388 = vadd.f32 %v260, %v387
    %v389 = vpop.f32.mrf.mxu0
    %390 = vmatprep.mubr.bf16.mxu0 0
    %391 = vmatmul.mubr.bf16.gmra.mxu0 %v237
    %v392 = vpop.f32.mrf.mxu0
    %v393 = vadd.f32 %v260, %v392
    %v394 = vpop.f32.mrf.mxu0
    %v395 = vpop.f32.mrf.mxu0
    %v396 = vadd.f32 %v260, %v395
    %v397 = vpop.f32.mrf.mxu0
    %398 = vmatprep.mubr.bf16.mxu0 0
    %399 = vmatmul.mubr.bf16.gmra.mxu0 %v238
    %v400 = vpop.f32.mrf.mxu0
    %v401 = vadd.f32 %v260, %v400
    %v402 = vpop.f32.mrf.mxu0
    %v403 = vpop.f32.mrf.mxu0
    %v404 = vadd.f32 %v260, %v403
    %v405 = vpop.f32.mrf.mxu0
    %406 = vdwg.mxu0
    %407 = vst [vmem:[#allocation2] sm:$0xff] %v345
    %408 = vst [vmem:[#allocation2 + $0x8] sm:$0xff] %v348
    %409 = vst [vmem:[#allocation2 + $0x10] sm:$0xff] %v353
    %410 = vst [vmem:[#allocation2 + $0x18] sm:$0xff] %v356
    %411 = vst [vmem:[#allocation2 + $0x20] sm:$0xff] %v361
    %412 = vst [vmem:[#allocation2 + $0x28] sm:$0xff] %v364
    %413 = vst [vmem:[#allocation2 + $0x30] sm:$0xff] %v369
    %414 = vst [vmem:[#allocation2 + $0x38] sm:$0xff] %v372
    %415 = vst [vmem:[#allocation2 + $0x40] sm:$0xff] %v377
    %416 = vst [vmem:[#allocation2 + $0x48] sm:$0xff] %v380
    %417 = vst [vmem:[#allocation2 + $0x50] sm:$0xff] %v385
    %418 = vst [vmem:[#allocation2 + $0x58] sm:$0xff] %v388
    %419 = vst [vmem:[#allocation2 + $0x60] sm:$0xff] %v393
    %420 = vst [vmem:[#allocation2 + $0x68] sm:$0xff] %v396
    %421 = vst [vmem:[#allocation2 + $0x70] sm:$0xff] %v401
    %422 = vst [vmem:[#allocation2 + $0x78] sm:$0xff] %v404
    // Predicated region
    $region22: #{tpu_custom_call.1} parent=1 // pred_check
      _
    $region23: #{tpu_custom_call.1} parent=1 // pred_check_branch
      %424 = sbr.rel (0) target = $region25
    $region24: #{tpu_custom_call.1} parent=1 // pred_region
      %s426 = ssub.s32 2048, 2048
      %427 = vsyncadd [#allocation3], %s426
      %s428 = sshll.u32 [#allocation2], 4
      %s429 = int_to_ptr.vmem [resolvable:$true] %s428
      %434 = dma.vmem_to_hbm [thread:$0]  %s429, 2048, %s5, [#allocation3], 128, 128, 8
    $region25: #{tpu_custom_call.1} parent=1 // pred_fallthru
      _
    // Predicated region
    $region26: #{tpu_custom_call.1} parent=1 // pred_check
      _
    $region27: #{tpu_custom_call.1} parent=1 // pred_check_branch
      %436 = sbr.rel (0) target = $region29
    $region28: #{tpu_custom_call.1} parent=1 // pred_region
      %437 = dma.done [#allocation3], 2048
    $region29: #{tpu_custom_call.1} parent=1 // pred_fallthru
      _
    %438 = vsyncpa [#allocation3], 1

</llo_original>
